<compile_context>
chip_gen: v7x
topology: tpu7x:2x2x1
jax: 0.10.0
libtpu: 0.0.40
codegen_flags: <defaults>
</compile_context>

<pallas_src>
import functools

import jax
import jax.numpy as jnp
from jax.experimental import pallas as pl
from jax.experimental.pallas import tpu as pltpu

EPS = 1e-5
_LANES = 128
_SUBLANES = 8                          # f32 sublane tile
_FAST_PATH_BYTES = 4 * 1024 * 1024     # fused single-kernel path threshold
_MAX_BLOCK_BYTES = 2 * 1024 * 1024     # per-buffer VMEM cap for the tiled path
_VMEM_LIMIT = 32 * 1024 * 1024


def _round_up(v, m):
    return (v + m - 1) // m * m


# ---------------------------------------------------------------------------
# Fast path: whole tensor resident in VMEM, one fused kernel (stats+normalize).
# ---------------------------------------------------------------------------
def _fused_bn_kernel(x_ref, gamma_ref, beta_ref, o_ref, *, m, eps):
    x = x_ref[...].astype(jnp.float32)                  # (N, C, HW)
    s = jnp.sum(x, axis=2, keepdims=True)               # (N, C, 1) lane reduce
    sq = jnp.sum(x * x, axis=2, keepdims=True)
    total = jnp.sum(s, axis=0, keepdims=True)           # (1, C, 1)
    total_sq = jnp.sum(sq, axis=0, keepdims=True)
    mean = total / m
    var = jnp.maximum(total_sq / m - mean * mean, 0.0)  # biased variance
    inv_std = jax.lax.rsqrt(var + eps)
    scale = gamma_ref[...] * inv_std                    # (C,1)*(1,C,1)->(1,C,1)
    shift = beta_ref[...] - mean * scale
    o_ref[...] = (x * scale + shift).astype(o_ref.dtype)


# ---------------------------------------------------------------------------
# Two-pass path: pass 1 -> per-(n, c) sums, pass 2 -> y = x*scale[c]+shift[c].
# ---------------------------------------------------------------------------
def _stats_kernel(x_ref, sum_ref, sq_ref, *, hw, block_l):
    """x_ref: (1, C, block_l) slab; sum/sq: (1, C, 1), resident over the r axis."""
    r = pl.program_id(1)

    @pl.when(r == 0)
    def _():
        sum_ref[...] = jnp.zeros_like(sum_ref)
        sq_ref[...] = jnp.zeros_like(sq_ref)

    x = x_ref[...].astype(jnp.float32)                  # (1, C, block_l)
    if hw % block_l != 0:
        # Ragged tail: boundary-block reads past HW are unspecified, so zero
        # those lanes here instead of padding the tensor on the host.
        lane = jax.lax.broadcasted_iota(jnp.int32, x.shape, 2)
        x = jnp.where(r * block_l + lane < hw, x, 0.0)
    sum_ref[...] += jnp.sum(x, axis=2, keepdims=True)
    sq_ref[...] += jnp.sum(x * x, axis=2, keepdims=True)


def _normalize_kernel(x_ref, scale_ref, shift_ref, o_ref):
    """y = x * scale[c] + shift[c]; scale/shift are resident (C, 1) blocks."""
    x = x_ref[...].astype(jnp.float32)                  # (1, C, block_l)
    o_ref[...] = (x * scale_ref[...] + shift_ref[...]).astype(o_ref.dtype)


def batchnorm2d_forward(x_nchw, gamma, beta, eps=EPS):
    """Training-mode nn.BatchNorm2d forward over an NCHW input."""
    N, C, H, W = x_nchw.shape
    HW = H * W
    M = N * HW                                           # elements per channel

    x3 = x_nchw.reshape(N, C, HW)                        # free: no pad, no copy
    gamma2 = gamma.astype(jnp.float32).reshape(C, 1)
    beta2 = beta.astype(jnp.float32).reshape(C, 1)

    c_pad = _round_up(C, _SUBLANES)
    full_vmem = N * c_pad * _round_up(HW, _LANES) * 4    # padded VMEM footprint

    # ---- small-input fast path: one fused kernel, zero HBM intermediates ----
    if full_vmem <= _FAST_PATH_BYTES:
        out3 = pl.pallas_call(
            functools.partial(_fused_bn_kernel, m=float(M), eps=float(eps)),
            out_shape=jax.ShapeDtypeStruct(x3.shape, x_nchw.dtype),
            compiler_params=pltpu.CompilerParams(vmem_limit_bytes=_VMEM_LIMIT),
        )(x3, gamma2, beta2)
        return out3.reshape(N, C, H, W)

    # ---- tile selection: lane-dense (C, block_l) slabs, <= ~2 MiB/buffer ----
    max_l = max((_MAX_BLOCK_BYTES // (c_pad * 4)) // _LANES * _LANES, _LANES)
    if HW <= max_l:
        block_l, rt = HW, 1          # block last dim == full extent: always legal
    else:
        block_l = max_l              # multiple of 128; ragged tail masked in-kernel
        rt = pl.cdiv(HW, block_l)

    x_spec = pl.BlockSpec((1, C, block_l), lambda n, r: (n, 0, r))

    # ---- pass 1: per-(n, c) sum / sum-of-squares; n parallel, r arbitrary ----
    sums, sqs = pl.pallas_call(
        functools.partial(_stats_kernel, hw=HW, block_l=block_l),
        out_shape=(jax.ShapeDtypeStruct((N, C, 1), jnp.float32),
                   jax.ShapeDtypeStruct((N, C, 1), jnp.float32)),
        grid=(N, rt),
        in_specs=[x_spec],
        out_specs=(pl.BlockSpec((1, C, 1), lambda n, r: (n, 0, 0)),
                   pl.BlockSpec((1, C, 1), lambda n, r: (n, 0, 0))),
        compiler_params=pltpu.CompilerParams(
            dimension_semantics=("parallel", "arbitrary"),
            vmem_limit_bytes=_VMEM_LIMIT),
    )(x3)

    # ---- tiny per-channel epilogue: fold stats + gamma/beta into scale/shift -
    total = jnp.sum(sums, axis=0)                        # (C, 1)
    total_sq = jnp.sum(sqs, axis=0)
    mean = total / M
    var = jnp.maximum(total_sq / M - mean * mean, 0.0)   # biased variance
    inv_std = jax.lax.rsqrt(var + eps)
    scale = gamma2 * inv_std
    shift = beta2 - mean * scale

    # ---- pass 2: y = x*scale[c] + shift[c]; flat fully-parallel grid --------
    t = N * rt
    xio_spec = pl.BlockSpec((1, C, block_l), lambda i: (i // rt, 0, i % rt))
    out3 = pl.pallas_call(
        _normalize_kernel,
        out_shape=jax.ShapeDtypeStruct(x3.shape, x_nchw.dtype),
        grid=(t,),
        in_specs=[xio_spec,
                  pl.BlockSpec((C, 1), lambda i: (0, 0)),
                  pl.BlockSpec((C, 1), lambda i: (0, 0))],
        out_specs=xio_spec,
        compiler_params=pltpu.CompilerParams(
            dimension_semantics=("parallel",),
            vmem_limit_bytes=_VMEM_LIMIT),
    )(x3, scale, shift)
    return out3.reshape(N, C, H, W)


if __name__ == "__main__":
    key = jax.random.PRNGKey(0)

    # Deterministic parameters matching PyTorch BatchNorm2d(3) init.
    gamma = jnp.ones((3,), jnp.float32)
    beta = jnp.zeros((3,), jnp.float32)

    # TODO(synk): running_mean/running_var buffer updates (training-time side
    # effect of nn.BatchNorm2d) are not modeled; they do not affect the output.

    def reference(x):
        mean = jnp.mean(x, axis=(0, 2, 3), keepdims=True)
        var = jnp.mean((x - mean) ** 2, axis=(0, 2, 3), keepdims=True)
        return ((x - mean) / jnp.sqrt(var + EPS)
                * gamma.reshape(1, 3, 1, 1) + beta.reshape(1, 3, 1, 1))

    shapes = [
        (2, 3, 16, 16),     # the ToyModel-sized input -> fused fast path
        (2, 3, 256, 512),   # two-pass path, multi-step pipelined grid
        (2, 3, 270, 270),   # two-pass path with ragged (non-128) tail masking
    ]
    for shp in shapes:
        key, sub = jax.random.split(key)
        x = jax.random.normal(sub, shp, dtype=jnp.float32)
        out = jax.block_until_ready(batchnorm2d_forward(x, gamma, beta))
        assert out.shape == x.shape and out.dtype == x.dtype
        err = float(jnp.max(jnp.abs(out - reference(x))))
        assert err < 2e-3, (shp, err)

    print("KERNEL_OK")
</pallas_src>

<mosaic_0001>
module attributes {stable_mosaic.version = 11 : i64} {
  func.func @_fused_bn_kernel(%arg0: memref<2x3x256xf32, #tpu.memory_space<vmem>>, %arg1: memref<3x1xf32, #tpu.memory_space<vmem>>, %arg2: memref<3x1xf32, #tpu.memory_space<vmem>>, %arg3: memref<2x3x256xf32, #tpu.memory_space<vmem>>) attributes {dimension_semantics = [], scalar_prefetch = 0 : i64, scratch_operands = 0 : i64, tpu.core_type = #tpu.core_type<tc>} {
    %c0 = arith.constant 0 : index
    %c0_0 = arith.constant 0 : index
    %c0_1 = arith.constant 0 : index
    %0 = vector.load %arg0[%c0, %c0_0, %c0_1] : memref<2x3x256xf32, #tpu.memory_space<vmem>>, vector<2x3x256xf32>
    %cst = arith.constant dense<0.000000e+00> : vector<2x3xf32>
    %1 = vector.multi_reduction <add>, %0, %cst [2] : vector<2x3x256xf32> to vector<2x3xf32>
    %2 = vector.shape_cast %1 : vector<2x3xf32> to vector<2x3x1xf32>
    %3 = arith.mulf %0, %0 : vector<2x3x256xf32>
    %cst_2 = arith.constant dense<0.000000e+00> : vector<2x3xf32>
    %4 = vector.multi_reduction <add>, %3, %cst_2 [2] : vector<2x3x256xf32> to vector<2x3xf32>
    %5 = vector.shape_cast %4 : vector<2x3xf32> to vector<2x3x1xf32>
    %cst_3 = arith.constant dense<0.000000e+00> : vector<3x1xf32>
    %6 = vector.multi_reduction <add>, %2, %cst_3 [0] : vector<2x3x1xf32> to vector<3x1xf32>
    %7 = vector.shape_cast %6 : vector<3x1xf32> to vector<1x3x1xf32>
    %cst_4 = arith.constant dense<0.000000e+00> : vector<3x1xf32>
    %8 = vector.multi_reduction <add>, %5, %cst_4 [0] : vector<2x3x1xf32> to vector<3x1xf32>
    %9 = vector.shape_cast %8 : vector<3x1xf32> to vector<1x3x1xf32>
    %cst_5 = arith.constant 5.120000e+02 : f32
    %10 = vector.broadcast %cst_5 : f32 to vector<1x3x1xf32>
    %11 = arith.divf %7, %10 : vector<1x3x1xf32>
    %cst_6 = arith.constant 5.120000e+02 : f32
    %12 = vector.broadcast %cst_6 : f32 to vector<1x3x1xf32>
    %13 = arith.divf %9, %12 : vector<1x3x1xf32>
    %14 = arith.mulf %11, %11 : vector<1x3x1xf32>
    %15 = arith.subf %13, %14 : vector<1x3x1xf32>
    %cst_7 = arith.constant 0.000000e+00 : f32
    %16 = vector.broadcast %cst_7 : f32 to vector<1x3x1xf32>
    %17 = arith.maximumf %15, %16 : vector<1x3x1xf32>
    %cst_8 = arith.constant 9.99999974E-6 : f32
    %18 = vector.broadcast %cst_8 : f32 to vector<1x3x1xf32>
    %19 = arith.addf %17, %18 : vector<1x3x1xf32>
    %20 = math.rsqrt %19 : vector<1x3x1xf32>
    %c0_9 = arith.constant 0 : index
    %c0_10 = arith.constant 0 : index
    %21 = vector.load %arg1[%c0_9, %c0_10] : memref<3x1xf32, #tpu.memory_space<vmem>>, vector<3x1xf32>
    %22 = vector.shape_cast %21 : vector<3x1xf32> to vector<1x3x1xf32>
    %23 = arith.mulf %22, %20 : vector<1x3x1xf32>
    %c0_11 = arith.constant 0 : index
    %c0_12 = arith.constant 0 : index
    %24 = vector.load %arg2[%c0_11, %c0_12] : memref<3x1xf32, #tpu.memory_space<vmem>>, vector<3x1xf32>
    %25 = arith.mulf %11, %23 : vector<1x3x1xf32>
    %26 = vector.shape_cast %24 : vector<3x1xf32> to vector<1x3x1xf32>
    %27 = arith.subf %26, %25 : vector<1x3x1xf32>
    %28 = vector.broadcast %23 : vector<1x3x1xf32> to vector<2x3x256xf32>
    %29 = arith.mulf %0, %28 : vector<2x3x256xf32>
    %30 = vector.broadcast %27 : vector<1x3x1xf32> to vector<2x3x256xf32>
    %31 = arith.addf %29, %30 : vector<2x3x256xf32>
    %c0_13 = arith.constant 0 : index
    %c0_14 = arith.constant 0 : index
    %c0_15 = arith.constant 0 : index
    %32 = vector.load %arg3[%c0_13, %c0_14, %c0_15] : memref<2x3x256xf32, #tpu.memory_space<vmem>>, vector<2x3x256xf32>
    tpu.vector_store %arg3[%c0_13, %c0_14, %c0_15], %31 {strides = array<i32>} : memref<2x3x256xf32, #tpu.memory_space<vmem>>, vector<2x3x256xf32>,
    return
  }
}

</mosaic_0001>

<llo_original>
// kernel: tpu_custom_call.1
$region0: #{tpu_custom_call.1}
  #allocation0 [shape = 'u32[]', space=smem, size = 0x4, offset = 0x4, fixed_abs, tag = 'smem constant byte address 0x4 - core index']
  #allocation1 [shape = 'u32[144,128]{1,0:T(1,128)}', space=vmem, size = 0x12000, scoped, tag = 'internal scratch']
  %s0 = inlined_call_operand.vmem [shape: f32[2,3,256], index: 0, kind: input, shape index: {}]
  %s1 = inlined_call_operand.vmem [shape: f32[3,1], index: 1, kind: input, shape index: {}]
  %s2 = inlined_call_operand.vmem [shape: f32[3,1], index: 2, kind: input, shape index: {}]
  %s3 = inlined_call_operand.vmem [shape: f32[2,3,256], index: 3, kind: output, shape index: {}]
  %s4 = sld [smem:[#allocation0]]
  $region22: #{tpu_custom_call.1} parent=0
    _
  %s6 = ssub.s32 1, %s4
  %s7 = scalar_select 0, %s6, %s4
  // Predicated region
  $region2: #{tpu_custom_call.1} parent=0 // pred_check
    _
  $region3: #{tpu_custom_call.1} parent=0 // pred_check_branch
    %9 = sbr.rel (0) target = $region5
  $region4: #{tpu_custom_call.1} parent=0 // pred_region
    _
  $region5: #{tpu_custom_call.1} parent=0 // pred_fallthru
    _
  // Predicated region
  $region6: #{tpu_custom_call.1} parent=0 // pred_check
    _
  $region7: #{tpu_custom_call.1} parent=0 // pred_check_branch
    %11 = sbr.rel (0) target = $region9
  $region8: #{tpu_custom_call.1} parent=0 // pred_region
    _
  $region9: #{tpu_custom_call.1} parent=0 // pred_fallthru
    _
  // Predicated region
  $region10: #{tpu_custom_call.1} parent=0 // pred_check
    _
  $region11: #{tpu_custom_call.1} parent=0 // pred_check_branch
    %13 = sbr.rel (0) target = $region13
  $region12: #{tpu_custom_call.1} parent=0 // pred_region
    _
  $region13: #{tpu_custom_call.1} parent=0 // pred_fallthru
    _
  %v14 = vld [vmem:[%s0] sm:$0x77]
  %v15 = vld [vmem:[%s0 + $0x8] sm:$0x77]
  %v18 = vcombine.high %v14, %v14
  %v19 = vcombine.high %v15, %v15
  %vm22 = vcmask 1042432
  %v23 = vsel %vm22, %v14, 0.0
  %v24 = vsel %vm22, %v18, 0.0
  %v25 = vadd.f32 %v23, %v24
  %26 = vadd.xlane.f32.xlu0 %v25
  %v27 = vpop.xlane.xlu0 %26
  %v28 = vsel %vm22, %v15, 0.0
  %v29 = vsel %vm22, %v19, 0.0
  %v30 = vadd.f32 %v28, %v29
  %31 = vadd.xlane.f32.xlu0 %v30
  %v32 = vpop.xlane.xlu0 %31
  %v33 = vmul.f32 %v14, %v14
  %v34 = vmul.f32 %v15, %v15
  %v37 = vcombine.high %v33, %v33
  %v38 = vcombine.high %v34, %v34
  %v41 = vsel %vm22, %v33, 0.0
  %v42 = vsel %vm22, %v37, 0.0
  %v43 = vadd.f32 %v41, %v42
  %44 = vadd.xlane.f32.xlu0 %v43
  %v45 = vpop.xlane.xlu0 %44
  %v46 = vsel %vm22, %v34, 0.0
  %v47 = vsel %vm22, %v38, 0.0
  %v48 = vadd.f32 %v46, %v47
  %49 = vadd.xlane.f32.xlu0 %v48
  %v50 = vpop.xlane.xlu0 %49
  %v51 = vsel %vm22, %v27, 0.0
  %v52 = vsel %vm22, %v32, 0.0
  %v53 = vadd.f32 %v51, %v52
  %v54 = vsel %vm22, %v45, 0.0
  %v55 = vsel %vm22, %v50, 0.0
  %v56 = vadd.f32 %v54, %v55
  %v57 = vrcp.pop 512.0
  %v58 = vmul.f32 %v53, %v57
  %v59 = vmul.f32 %v56, %v57
  %v60 = vmul.f32 %v58, %v58
  %v61 = vsub.f32 %v59, %v60
  %v62 = vmax.f32 %v61, 0.0
  %v63 = vadd.f32 %v62, 1e-05
  %v64 = vrsqrt.pop %v63
  %v65 = vld [vmem:[%s1] sm:$0x7]
  %v66 = vmul.f32 %v65, %v64
  %v67 = vld [vmem:[%s2] sm:$0x7]
  %v68 = vmul.f32 %v58, %v66
  %v69 = vsub.f32 %v67, %v68
  %71 = vset.pattern.permute.xlu0 0
  %72 = vperm.xlu0 %71, %v66
  %v73 = vpop.permute.xlu0 %72
  %v75 = vunpack.c.l.s4 839922192
  %v76 = vunpack.c.0.s8 %v75
  %v77 = vlaneseq
  %v78 = vshrl.u32 %v77, 7
  %v79 = vsub.s32 %v76, %v78
  %v80 = vrot.slane %v73, %v79
  %v82 = vmul.f32 %v14, %v80
  %v83 = vmul.f32 %v15, %v80
  %85 = vset.pattern.permute.xlu0 0
  %86 = vperm.xlu0 %85, %v69
  %v87 = vpop.permute.xlu0 %86
  %v89 = vunpack.c.l.s4 839922192
  %v90 = vunpack.c.0.s8 %v89
  %v91 = vlaneseq
  %v92 = vshrl.u32 %v91, 7
  %v93 = vsub.s32 %v90, %v92
  %v94 = vrot.slane %v87, %v93
  %v96 = vadd.f32 %v82, %v94
  %v97 = vadd.f32 %v83, %v94
  %98 = vst [vmem:[%s3] sm:$0x77] %v96
  %99 = vst [vmem:[%s3 + $0x8] sm:$0x77] %v97
  // Predicated region
  $region14: #{tpu_custom_call.1} parent=0 // pred_check
    _
  $region15: #{tpu_custom_call.1} parent=0 // pred_check_branch
    %101 = sbr.rel (0) target = $region17
  $region16: #{tpu_custom_call.1} parent=0 // pred_region
    _
  $region17: #{tpu_custom_call.1} parent=0 // pred_fallthru
    _
  // Predicated region
  $region18: #{tpu_custom_call.1} parent=0 // pred_check
    _
  $region19: #{tpu_custom_call.1} parent=0 // pred_check_branch
    %103 = sbr.rel (0) target = $region21
  $region20: #{tpu_custom_call.1} parent=0 // pred_region
    _
  $region21: #{tpu_custom_call.1} parent=0 // pred_fallthru
    _

</llo_original>
